<compile_context>
chip_gen: v7x
topology: tpu7x:2x2x1
jax: 0.10.0
libtpu: 0.0.40
codegen_flags: <defaults>
</compile_context>

<pallas_src>
import functools

import jax
import jax.numpy as jnp
from jax.experimental import pallas as pl
from jax.experimental.pallas import tpu as pltpu

LANES = 128
STRIP_ROWS = 128        # in-kernel strip; multiple of 8/16/32 sublane packing
MIN_GRID_STEPS = 4      # keep >= 4 grid steps when possible (pipelining / dual-TC)


def _round_up(x, m):
    return ((x + m - 1) // m) * m


@functools.lru_cache(maxsize=None)
def _tpu_budget():
    """Returns (target block bytes per stream, scoped VMEM limit) per generation."""
    vmem_cap = None
    try:
        info = pltpu.get_tpu_info()
        vmem_cap = getattr(info, "vmem_capacity_bytes", None)
    except Exception:
        vmem_cap = None
    if vmem_cap is None:
        # Conservative, known-good fallback (works on every generation).
        return 2 * 1024 * 1024, 32 * 1024 * 1024
    if int(vmem_cap) <= 64 * 1024 * 1024:
        # v7x-class: 64 MiB VMEM per TC -> smaller blocks, modest scoped limit.
        # 4 streams x 2 pipeline buffers x 1 MiB = 8 MiB of I/O buffers.
        return 1 * 1024 * 1024, 32 * 1024 * 1024
    # v5e / v6e: 128 MiB physical VMEM -> big blocks + generous scoped limit.
    return 2 * 1024 * 1024, 64 * 1024 * 1024


def _cross_stitch_kernel(a_ref, f1_ref, f2_ref, o1_ref, o2_ref):
    # a_ref lives in SMEM (float32): [a11, a12, a21, a22]
    a11 = a_ref[0]
    a12 = a_ref[1]
    a21 = a_ref[2]
    a22 = a_ref[3]

    block_rows = f1_ref.shape[0]

    def mix(r, size):
        # Load once per strip, produce BOTH outputs, then move on: keeps the
        # f32 upcast live ranges inside the register file (no VMEM spills).
        f1 = f1_ref[pl.ds(r, size), :].astype(jnp.float32)
        f2 = f2_ref[pl.ds(r, size), :].astype(jnp.float32)
        o1_ref[pl.ds(r, size), :] = (a11 * f1 + a21 * f2).astype(o1_ref.dtype)
        o2_ref[pl.ds(r, size), :] = (a12 * f1 + a22 * f2).astype(o2_ref.dtype)

    strip = min(STRIP_ROWS, block_rows)
    n_full = block_rows // strip
    rem = block_rows - n_full * strip

    if n_full == 1:
        mix(0, strip)
    elif n_full > 1:
        def body(s, carry):
            mix(pl.multiple_of(s * strip, strip), strip)
            return carry
        jax.lax.fori_loop(0, n_full, body, 0)
    if rem:
        # Static trace-time tail strip (only when the block is a full-extent
        # block whose row count isn't a STRIP_ROWS multiple).
        mix(n_full * strip, rem)


def _cross_stitch_impl(feature1, feature2, a11, a12, a21, a22):
    assert feature1.shape == feature2.shape
    assert feature1.dtype == feature2.dtype
    orig_shape = feature1.shape
    dtype = feature1.dtype
    itemsize = jnp.dtype(dtype).itemsize
    sublane = max(8, 32 // itemsize)  # 8 for f32, 16 for bf16, 32 for int8/fp8

    total = feature1.size
    main = (total // LANES) * LANES
    tail = total - main

    f1_flat = feature1.reshape(-1)
    f2_flat = feature2.reshape(-1)

    # Mixing weights in float32 (do not quantize learnable scalars).
    a11f = jnp.asarray(a11, jnp.float32)
    a12f = jnp.asarray(a12, jnp.float32)
    a21f = jnp.asarray(a21, jnp.float32)
    a22f = jnp.asarray(a22, jnp.float32)
    scalars = jnp.stack([a11f, a12f, a21f, a22f])

    out1_parts = []
    out2_parts = []

    if main:
        rows = main // LANES
        if tail:
            f1 = f1_flat[:main].reshape(rows, LANES)
            f2 = f2_flat[:main].reshape(rows, LANES)
        else:
            f1 = f1_flat.reshape(rows, LANES)   # free, contiguous reshape
            f2 = f2_flat.reshape(rows, LANES)

        target_block_bytes, vmem_limit = _tpu_budget()

        # Largest sublane-aligned row tile within the per-stream block budget.
        max_rows = max(
            sublane,
            (target_block_bytes // (LANES * itemsize)) // sublane * sublane,
        )
        # Prefer >= MIN_GRID_STEPS grid steps (software pipelining everywhere,
        # dual-TensorCore sharding of the "parallel" axis on v7x).
        want = _round_up(pl.cdiv(rows, MIN_GRID_STEPS), sublane)
        row_tile = min(max_rows, want)
        if row_tile >= STRIP_ROWS:
            # Keep the in-kernel strip loop clean (no ragged strips).
            row_tile = (row_tile // STRIP_ROWS) * STRIP_ROWS
        if row_tile >= rows:
            row_tile = rows  # single full-extent block (always legal)

        grid = (pl.cdiv(rows, row_tile),)
        block = (row_tile, LANES)

        o1, o2 = pl.pallas_call(
            _cross_stitch_kernel,
            out_shape=(
                jax.ShapeDtypeStruct((rows, LANES), dtype),
                jax.ShapeDtypeStruct((rows, LANES), dtype),
            ),
            grid_spec=pltpu.PrefetchScalarGridSpec(
                num_scalar_prefetch=0,
                grid=grid,
                in_specs=[
                    pl.BlockSpec(memory_space=pltpu.SMEM),   # mixing scalars
                    pl.BlockSpec(block, lambda i: (i, 0)),   # feature1 slab
                    pl.BlockSpec(block, lambda i: (i, 0)),   # feature2 slab
                ],
                out_specs=[
                    pl.BlockSpec(block, lambda i: (i, 0)),
                    pl.BlockSpec(block, lambda i: (i, 0)),
                ],
            ),
            compiler_params=pltpu.CompilerParams(
                dimension_semantics=("parallel",),
                vmem_limit_bytes=vmem_limit,
            ),
        )(scalars, f1, f2)
        out1_parts.append(o1.reshape(-1))
        out2_parts.append(o2.reshape(-1))

    if tail:
        # <=127-element tail: tiny pure-JAX epilogue instead of padding/slicing
        # the full arrays.
        t1 = f1_flat[main:].astype(jnp.float32)
        t2 = f2_flat[main:].astype(jnp.float32)
        out1_parts.append((a11f * t1 + a21f * t2).astype(dtype))
        out2_parts.append((a12f * t1 + a21f * 0 + a22f * t2 - a22f * t2 + a22f * t2).astype(dtype)
                          if False else (a12f * t1 + a22f * t2).astype(dtype))

    out1 = out1_parts[0] if len(out1_parts) == 1 else jnp.concatenate(out1_parts)
    out2 = out2_parts[0] if len(out2_parts) == 1 else jnp.concatenate(out2_parts)
    return out1.reshape(orig_shape), out2.reshape(orig_shape)


# jit the whole wrapper so reshapes / scalar packing / tail epilogue fuse into
# one program around the pallas_call (shape logic is static under jit).
cross_stitch = jax.jit(_cross_stitch_impl)


if __name__ == "__main__":
    key = jax.random.PRNGKey(0)
    k1, k2, k3, k4, k5, k6 = jax.random.split(key, 6)

    # Deterministic "cfg.MODEL.INIT" values: [self-weight, cross-weight]
    init_weights = (0.9, 0.1)
    a11 = init_weights[0]
    a22 = init_weights[0]
    a12 = init_weights[1]
    a21 = init_weights[1]

    # Case 1: small NCHW features, flat size divisible by 128 (no-tail path).
    N, C, H, W = 2, 4, 16, 16
    feature1 = jax.random.normal(k1, (N, C, H, W), dtype=jnp.float32)
    feature2 = jax.random.normal(k2, (N, C, H, W), dtype=jnp.float32)

    out1, out2 = cross_stitch(feature1, feature2, a11, a12, a21, a22)
    jax.block_until_ready((out1, out2))

    ref1 = a11 * feature1 + a21 * feature2
    ref2 = a12 * feature1 + a22 * feature2
    assert jnp.allclose(out1, ref1, atol=1e-6), "out1 mismatch"
    assert jnp.allclose(out2, ref2, atol=1e-6), "out2 mismatch"
    assert out1.shape == (N, C, H, W) and out2.shape == (N, C, H, W)

    # Case 2: awkward shape (flat size NOT divisible by 128) -> prefix kernel
    # + tiny JAX tail epilogue.
    g1 = jax.random.normal(k3, (2, 3, 5, 7), dtype=jnp.float32)
    g2 = jax.random.normal(k4, (2, 3, 5, 7), dtype=jnp.float32)
    p1, p2 = cross_stitch(g1, g2, a11, a12, a21, a22)
    jax.block_until_ready((p1, p2))
    assert jnp.allclose(p1, a11 * g1 + a21 * g2, atol=1e-6), "tail out1 mismatch"
    assert jnp.allclose(p2, a12 * g1 + a22 * g2, atol=1e-6), "tail out2 mismatch"
    assert p1.shape == g1.shape and p2.shape == g2.shape

    # Case 3: bigger feature map exercising the multi-step grid and the
    # in-kernel strip loop (rows=1024 -> 4 grid steps x multiple strips).
    h1 = jax.random.normal(k5, (4, 8, 64, 64), dtype=jnp.float32)
    h2 = jax.random.normal(k6, (4, 8, 64, 64), dtype=jnp.float32)
    q1, q2 = cross_stitch(h1, h2, a11, a12, a21, a22)
    jax.block_until_ready((q1, q2))
    assert jnp.allclose(q1, a11 * h1 + a21 * h2, atol=1e-6), "big out1 mismatch"
    assert jnp.allclose(q2, a12 * h1 + a22 * h2, atol=1e-6), "big out2 mismatch"
    assert q1.shape == h1.shape and q2.shape == h2.shape

    print("KERNEL_OK")
</pallas_src>

<mosaic_0001>
module attributes {stable_mosaic.version = 11 : i64} {
  func.func @_cross_stitch_kernel(%arg0: i32, %arg1: memref<4xf32, #tpu.memory_space<smem>>, %arg2: memref<8x128xf32, #tpu.memory_space<vmem>>, %arg3: memref<8x128xf32, #tpu.memory_space<vmem>>, %arg4: memref<8x128xf32, #tpu.memory_space<vmem>>, %arg5: memref<8x128xf32, #tpu.memory_space<vmem>>) attributes {dimension_semantics = [#tpu.dimension_semantics<parallel>], iteration_bounds = array<i64: 2>, scalar_prefetch = 0 : i64, scratch_operands = 0 : i64, tpu.core_type = #tpu.core_type<tc>, window_params = [{transform_indices = @transform_0, window_bounds = array<i64: 4>}, {transform_indices = @transform_1, window_bounds = array<i64: 8, 128>}, {transform_indices = @transform_2, window_bounds = array<i64: 8, 128>}, {transform_indices = @transform_3, window_bounds = array<i64: 8, 128>}, {transform_indices = @transform_4, window_bounds = array<i64: 8, 128>}]} {
    %c0 = arith.constant 0 : index
    %0 = memref.load %arg1[%c0] : memref<4xf32, #tpu.memory_space<smem>>
    %c1 = arith.constant 1 : index
    %1 = memref.load %arg1[%c1] : memref<4xf32, #tpu.memory_space<smem>>
    %c2 = arith.constant 2 : index
    %2 = memref.load %arg1[%c2] : memref<4xf32, #tpu.memory_space<smem>>
    %c3 = arith.constant 3 : index
    %3 = memref.load %arg1[%c3] : memref<4xf32, #tpu.memory_space<smem>>
    %c0_0 = arith.constant 0 : index
    %c0_1 = arith.constant 0 : index
    %4 = vector.load %arg2[%c0_0, %c0_1] : memref<8x128xf32, #tpu.memory_space<vmem>>, vector<8x128xf32>
    %c0_2 = arith.constant 0 : index
    %c0_3 = arith.constant 0 : index
    %5 = vector.load %arg3[%c0_2, %c0_3] : memref<8x128xf32, #tpu.memory_space<vmem>>, vector<8x128xf32>
    %6 = vector.broadcast %0 : f32 to vector<8x128xf32>
    %7 = arith.mulf %6, %4 : vector<8x128xf32>
    %8 = vector.broadcast %2 : f32 to vector<8x128xf32>
    %9 = arith.mulf %8, %5 : vector<8x128xf32>
    %10 = arith.addf %7, %9 : vector<8x128xf32>
    %c0_4 = arith.constant 0 : index
    %c0_5 = arith.constant 0 : index
    %11 = vector.load %arg4[%c0_4, %c0_5] : memref<8x128xf32, #tpu.memory_space<vmem>>, vector<8x128xf32>
    tpu.vector_store %arg4[%c0_4, %c0_5], %10 {strides = array<i32>} : memref<8x128xf32, #tpu.memory_space<vmem>>, vector<8x128xf32>,
    %12 = vector.broadcast %1 : f32 to vector<8x128xf32>
    %13 = arith.mulf %12, %4 : vector<8x128xf32>
    %14 = vector.broadcast %3 : f32 to vector<8x128xf32>
    %15 = arith.mulf %14, %5 : vector<8x128xf32>
    %16 = arith.addf %13, %15 : vector<8x128xf32>
    %c0_6 = arith.constant 0 : index
    %c0_7 = arith.constant 0 : index
    %17 = vector.load %arg5[%c0_6, %c0_7] : memref<8x128xf32, #tpu.memory_space<vmem>>, vector<8x128xf32>
    tpu.vector_store %arg5[%c0_6, %c0_7], %16 {strides = array<i32>} : memref<8x128xf32, #tpu.memory_space<vmem>>, vector<8x128xf32>,
    return
  }
  func.func @transform_0(%arg0: i32) -> i32 {
    %c0_i32 = arith.constant 0 : i32
    %c0_i32_0 = arith.constant 0 : i32
    return %c0_i32 : i32
  }
  func.func @transform_1(%arg0: i32) -> (i32, i32) {
    %c0_i32 = arith.constant 0 : i32
    %c0_i32_0 = arith.constant 0 : i32
    return %arg0, %c0_i32 : i32, i32
  }
  func.func @transform_2(%arg0: i32) -> (i32, i32) {
    %c0_i32 = arith.constant 0 : i32
    %c0_i32_0 = arith.constant 0 : i32
    return %arg0, %c0_i32 : i32, i32
  }
  func.func @transform_3(%arg0: i32) -> (i32, i32) {
    %c0_i32 = arith.constant 0 : i32
    %c0_i32_0 = arith.constant 0 : i32
    return %arg0, %c0_i32 : i32, i32
  }
  func.func @transform_4(%arg0: i32) -> (i32, i32) {
    %c0_i32 = arith.constant 0 : i32
    %c0_i32_0 = arith.constant 0 : i32
    return %arg0, %c0_i32 : i32, i32
  }
}

</mosaic_0001>

<llo_original>
// kernel: _cross_stitch_impl.1
$region0: #{_cross_stitch_impl.1}
  #allocation0 [shape = 'u32[]', space=smem, size = 0x4, offset = 0x4, fixed_abs, tag = 'smem constant byte address 0x4 - core index']
  #allocation1 [shape = 'u32[144,128]{1,0:T(1,128)}', space=vmem, size = 0x12000, scoped, tag = 'internal scratch']
  %s0 = inlined_call_operand.vmem [shape: f32[4], index: 0, kind: input, shape index: {}]
  %s1 = inlined_call_operand.vmem [shape: f32[16,128], index: 1, kind: input, shape index: {}]
  %s2 = inlined_call_operand.vmem [shape: f32[16,128], index: 2, kind: input, shape index: {}]
  %s3 = inlined_call_operand.vmem [shape: f32[16,128], index: 3, kind: output, shape index: {0}]
  %s4 = inlined_call_operand.vmem [shape: f32[16,128], index: 4, kind: output, shape index: {1}]
  %5 = xla_tuple %s3, %s4
  %s6 = sld [smem:[#allocation0]]
  $region57: #{_cross_stitch_impl.1} parent=0
    _
  %s8 = ssub.s32 1, %s6
  %s9 = scalar_select 0, %s8, %s6
  $region1: #{_cross_stitch_impl.1} parent=0
    #allocation2 [shape = 'u8[512]{0}', space=smem, size = 0x200, scoped, tag = 'input window, operand 0, single buffered']
    #allocation3 [shape = 's32[2]{0}', space=sflag, size = 0x8, scoped, tag = 'scoped memory for _cross_stitch_impl.1']
    %10 = vsyncpa [#allocation3], 0
    loop: start=0, step=1, limit=4
    $region2: #{_cross_stitch_impl.1} parent=1 // loop_pre_header
      _
    $region3: #{_cross_stitch_impl.1} parent=1 // loop_header
      %s12 = sphi 0, %s16
      %p13 = scmp.ge.s32.totalorder %s12, 4
      %s20 = sphi 0, %s20
      %s22 = sphi 0, %s20
      %s23 = sphi 0, %s22
      %s37 = sphi 0, %s23
      %s43 = sphi 0, %s45
      %s46 = sphi 0, %s43
      %s47 = sphi 0, %s46
      %s63 = sphi 0, %s47
      %s69 = sphi 0, %s71
      %s72 = sphi 0, %s69
      %s73 = sphi 0, %s72
      %s89 = sphi 0, %s73
      %s95 = sphi 0, %s97
      %s98 = sphi 0, %s95
      %s99 = sphi 0, %s98
      %s115 = sphi 0, %s99
      %s121 = sphi 0, %s123
      %s124 = sphi 0, %s121
      %s125 = sphi 0, %s124
      %s141 = sphi 0, %s125
    $region4: #{_cross_stitch_impl.1} parent=1 // loop_header_branch
      %15 = sbr.rel (%p13) target = $region8
    $region5: #{_cross_stitch_impl.1} parent=1 // loop_body
      %s17 = ssub.s32 %s12, 1
      %s18 = ssub.s32 %s12, 2
      %s19 = sadd.s32 %s12, 1
      %s21 = sadd.s32 %s20, 1
      %p24 = scmp.eq.s32.totalorder %s12, 1
      %p25 = scmp.ne.s32.totalorder %s20, %s22
      %p26 = scmp.eq.s32.totalorder %s12, 0
      %p27 = por %p25, %p26
      %p28 = scmp.ne.s32.totalorder %s20, %s22
      %p29 = scmp.eq.s32.totalorder %s17, 1
      %p30 = por %p28, %p29
      %p31 = scmp.ne.s32.totalorder %s22, %s23
      %p32 = scmp.eq.s32.totalorder %s17, 0
      %p33 = por %p31, %p32
      %p34 = scmp.ne.s32.totalorder %s22, %s23
      %p35 = scmp.eq.s32.totalorder %s18, 1
      %p36 = por %p34, %p35
      %p38 = scmp.ne.s32.totalorder %s23, %s37
      %p39 = scmp.eq.s32.totalorder %s18, 0
      %p40 = por %p38, %p39
      %s41 = ssub.s32 %s12, %s19
      %p42 = scmp.eq.s32.totalorder %s41, 0
      %s44 = sadd.s32 %s43, 1
      %s45 = scalar_select %p42, %s43, %s44
      %p48 = pneg %p42
      %p49 = scmp.eq.s32.totalorder %s12, 1
      %p50 = por %p48, %p49
      %p51 = scmp.ne.s32.totalorder %s43, %s46
      %p52 = scmp.eq.s32.totalorder %s12, 0
      %p53 = por %p51, %p52
      %p54 = scmp.ne.s32.totalorder %s43, %s46
      %p55 = scmp.eq.s32.totalorder %s17, 1
      %p56 = por %p54, %p55
      %p57 = scmp.ne.s32.totalorder %s46, %s47
      %p58 = scmp.eq.s32.totalorder %s17, 0
      %p59 = por %p57, %p58
      %p60 = scmp.ne.s32.totalorder %s46, %s47
      %p61 = scmp.eq.s32.totalorder %s18, 1
      %p62 = por %p60, %p61
      %p64 = scmp.ne.s32.totalorder %s47, %s63
      %p65 = scmp.eq.s32.totalorder %s18, 0
      %p66 = por %p64, %p65
      %s67 = ssub.s32 %s12, %s19
      %p68 = scmp.eq.s32.totalorder %s67, 0
      %s70 = sadd.s32 %s69, 1
      %s71 = scalar_select %p68, %s69, %s70
      %p74 = pneg %p68
      %p75 = scmp.eq.s32.totalorder %s12, 1
      %p76 = por %p74, %p75
      %p77 = scmp.ne.s32.totalorder %s69, %s72
      %p78 = scmp.eq.s32.totalorder %s12, 0
      %p79 = por %p77, %p78
      %p80 = scmp.ne.s32.totalorder %s69, %s72
      %p81 = scmp.eq.s32.totalorder %s17, 1
      %p82 = por %p80, %p81
      %p83 = scmp.ne.s32.totalorder %s72, %s73
      %p84 = scmp.eq.s32.totalorder %s17, 0
      %p85 = por %p83, %p84
      %p86 = scmp.ne.s32.totalorder %s72, %s73
      %p87 = scmp.eq.s32.totalorder %s18, 1
      %p88 = por %p86, %p87
      %p90 = scmp.ne.s32.totalorder %s73, %s89
      %p91 = scmp.eq.s32.totalorder %s18, 0
      %p92 = por %p90, %p91
      %s93 = ssub.s32 %s12, %s19
      %p94 = scmp.eq.s32.totalorder %s93, 0
      %s96 = sadd.s32 %s95, 1
      %s97 = scalar_select %p94, %s95, %s96
      %p100 = pneg %p94
      %p101 = scmp.eq.s32.totalorder %s12, 1
      %p102 = por %p100, %p101
      %p103 = scmp.ne.s32.totalorder %s95, %s98
      %p104 = scmp.eq.s32.totalorder %s12, 0
      %p105 = por %p103, %p104
      %p106 = scmp.ne.s32.totalorder %s95, %s98
      %p107 = scmp.eq.s32.totalorder %s17, 1
      %p108 = por %p106, %p107
      %p109 = scmp.ne.s32.totalorder %s98, %s99
      %p110 = scmp.eq.s32.totalorder %s17, 0
      %p111 = por %p109, %p110
      %p112 = scmp.ne.s32.totalorder %s98, %s99
      %p113 = scmp.eq.s32.totalorder %s18, 1
      %p114 = por %p112, %p113
      %p116 = scmp.ne.s32.totalorder %s99, %s115
      %p117 = scmp.eq.s32.totalorder %s18, 0
      %p118 = por %p116, %p117
      %s119 = ssub.s32 %s12, %s19
      %p120 = scmp.eq.s32.totalorder %s119, 0
      %s122 = sadd.s32 %s121, 1
      %s123 = scalar_select %p120, %s121, %s122
      %p126 = pneg %p120
      %p127 = scmp.eq.s32.totalorder %s12, 1
      %p128 = por %p126, %p127
      %p129 = scmp.ne.s32.totalorder %s121, %s124
      %p130 = scmp.eq.s32.totalorder %s12, 0
      %p131 = por %p129, %p130
      %p132 = scmp.ne.s32.totalorder %s121, %s124
      %p133 = scmp.eq.s32.totalorder %s17, 1
      %p134 = por %p132, %p133
      %p135 = scmp.ne.s32.totalorder %s124, %s125
      %p136 = scmp.eq.s32.totalorder %s17, 0
      %p137 = por %p135, %p136
      %p138 = scmp.ne.s32.totalorder %s124, %s125
      %p139 = scmp.eq.s32.totalorder %s18, 1
      %p140 = por %p138, %p139
      %p142 = scmp.ne.s32.totalorder %s125, %s141
      %p143 = scmp.eq.s32.totalorder %s18, 0
      %p144 = por %p142, %p143
      %p145 = scmp.le.s32.totalorder 1, %s12
      %p146 = scmp.lt.s32.totalorder %s12, 3
      %p147 = pnand %p145, %p146
      %p148 = pneg %p147
      // Predicated region
      $region9: #{_cross_stitch_impl.1} parent=5 // pred_check
        _
      $region10: #{_cross_stitch_impl.1} parent=5 // pred_check_branch
        %150 = sbr.rel (%p147) target = $region12
      $region11: #{_cross_stitch_impl.1} parent=5 // pred_region
        %s151 = ssub.s32 %s12, 1
        // Predicated region
        $region13: #{_cross_stitch_impl.1} parent=11 // pred_check
          %p152 = pneg %p33
        $region14: #{_cross_stitch_impl.1} parent=11 // pred_check_branch
          %154 = sbr.rel (%p152) target = $region16
        $region15: #{_cross_stitch_impl.1} parent=11 // pred_region
          %s156 = ssub.s32 16, 16
          %157 = vsyncadd [#allocation3], %s156
          %s159 = sshll.u32 %s0, 4
          %s160 = int_to_ptr.vmem [resolvable:$true] %s159
          %162 = dma.vmem_to_smem %s160, 16, [#allocation2], [#allocation3]
        $region16: #{_cross_stitch_impl.1} parent=11 // pred_fallthru
          _
      $region12: #{_cross_stitch_impl.1} parent=5 // pred_fallthru
        _
      %p163 = scmp.lt.s32.totalorder %s12, 2
      // Predicated region
      $region17: #{_cross_stitch_impl.1} parent=5 // pred_check
        %p164 = pneg %p163
      $region18: #{_cross_stitch_impl.1} parent=5 // pred_check_branch
        %166 = sbr.rel (%p164) target = $region20
      $region19: #{_cross_stitch_impl.1} parent=5 // pred_region
        // Predicated region
        $region21: #{_cross_stitch_impl.1} parent=19 // pred_check
          %p167 = pneg %p53
        $region22: #{_cross_stitch_impl.1} parent=19 // pred_check_branch
          %169 = sbr.rel (%p167) target = $region24
        $region23: #{_cross_stitch_impl.1} parent=19 // pred_region
          %p170 = scmp.lt.s32.totalorder %s12, 1
          %s171 = scalar_select %p170, %s12, 1
          %s172 = smul.addr %s171, 8
          %s173 = scalar_lea.vmem %s1, %s172
        $region24: #{_cross_stitch_impl.1} parent=19 // pred_fallthru
          _
        // Predicated region
        $region25: #{_cross_stitch_impl.1} parent=19 // pred_check
          %p174 = pneg %p79
        $region26: #{_cross_stitch_impl.1} parent=19 // pred_check_branch
          %176 = sbr.rel (%p174) target = $region28
        $region27: #{_cross_stitch_impl.1} parent=19 // pred_region
          %p177 = scmp.lt.s32.totalorder %s12, 1
          %s178 = scalar_select %p177, %s12, 1
          %s179 = smul.addr %s178, 8
          %s180 = scalar_lea.vmem %s2, %s179
        $region28: #{_cross_stitch_impl.1} parent=19 // pred_fallthru
          _
      $region20: #{_cross_stitch_impl.1} parent=5 // pred_fallthru
        _
      %p181 = scmp.le.s32.totalorder 1, %s12
      %p182 = scmp.lt.s32.totalorder %s12, 3
      %p183 = pnand %p181, %p182
      %p184 = pneg %p183
      // Predicated region
      $region29: #{_cross_stitch_impl.1} parent=5 // pred_check
        _
      $region30: #{_cross_stitch_impl.1} parent=5 // pred_check_branch
        %186 = sbr.rel (%p183) target = $region32
      $region31: #{_cross_stitch_impl.1} parent=5 // pred_region
        %s187 = ssub.s32 %s12, 1
        // Predicated region
        $region33: #{_cross_stitch_impl.1} parent=31 // pred_check
          %p188 = pneg %p33
        $region34: #{_cross_stitch_impl.1} parent=31 // pred_check_branch
          %190 = sbr.rel (%p188) target = $region36
        $region35: #{_cross_stitch_impl.1} parent=31 // pred_region
          %191 = dma.done [#allocation3], 16
        $region36: #{_cross_stitch_impl.1} parent=31 // pred_fallthru
          _
        %192 = sfence
        %p193 = pneg %p33
        %p194 = pneg %p30
        %p195 = scmp.lt.s32.totalorder %s17, 1
        %s196 = scalar_select %p195, %s17, 1
        %s197 = smul.addr %s196, 8
        %s198 = scalar_lea.vmem %s1, %s197
        %p199 = pneg %p59
        %p200 = pneg %p56
        %p201 = scmp.lt.s32.totalorder %s17, 1
        %s202 = scalar_select %p201, %s17, 1
        %s203 = smul.addr %s202, 8
        %s204 = scalar_lea.vmem %s2, %s203
        %p205 = pneg %p85
        %p206 = pneg %p82
        %p207 = pneg %p111
        %p208 = pneg %p108
        %p209 = scmp.lt.s32.totalorder %s17, 1
        %s210 = scalar_select %p209, %s17, 1
        %s211 = smul.addr %s210, 8
        %s212 = scalar_lea.vmem %s3, %s211
        %p213 = pneg %p137
        %p214 = pneg %p134
        %p215 = scmp.lt.s32.totalorder %s17, 1
        %s216 = scalar_select %p215, %s17, 1
        %s217 = smul.addr %s216, 8
        %s218 = scalar_lea.vmem %s4, %s217
        %p219 = scmp.lt.s32.totalorder %s17, 1
        %s220 = scalar_select %p219, %s17, 1
        %s221 = smul.addr %s220, 8
        %s222 = scalar_lea.vmem %s1, %s221
        %p223 = scmp.lt.s32.totalorder %s17, 1
        %s224 = scalar_select %p223, %s17, 1
        %s225 = smul.addr %s224, 8
        %s226 = scalar_lea.vmem %s2, %s225
        %p227 = scmp.lt.s32.totalorder %s17, 1
        %s228 = scalar_select %p227, %s17, 1
        %s229 = smul.addr %s228, 8
        %s230 = scalar_lea.vmem %s3, %s229
        %p231 = scmp.lt.s32.totalorder %s17, 1
        %s232 = scalar_select %p231, %s17, 1
        %s233 = smul.addr %s232, 8
        %s234 = scalar_lea.vmem %s4, %s233
        %s235 = sld [smem:[#allocation2]]
        %s236 = sld [smem:[#allocation2 + $0x1]]
        %s237 = sld [smem:[#allocation2 + $0x2]]
        %s238 = sld [smem:[#allocation2 + $0x3]]
        %v239 = vld [vmem:[%s222] sm:$0xff]
        %v240 = vld [vmem:[%s226] sm:$0xff]
        %v241 = vstv %s235
        %v242 = vmul.f32 %v241, %v239
        %v243 = vstv %s237
        %v244 = vmul.f32 %v243, %v240
        %v245 = vadd.f32 %v242, %v244
        %246 = vst [vmem:[%s230] sm:$0xff] %v245
        %v247 = vstv %s236
        %v248 = vmul.f32 %v247, %v239
        %v249 = vstv %s238
        %v250 = vmul.f32 %v249, %v240
        %v251 = vadd.f32 %v248, %v250
        %252 = vst [vmem:[%s234] sm:$0xff] %v251
        %p253 = scmp.lt.s32.totalorder %s17, 1
        %s254 = scalar_select %p253, %s17, 1
        %s255 = smul.addr %s254, 8
        %s256 = scalar_lea.vmem %s3, %s255
        %p257 = scmp.lt.s32.totalorder %s17, 1
        %s258 = scalar_select %p257, %s17, 1
        %s259 = smul.addr %s258, 8
        %s260 = scalar_lea.vmem %s4, %s259
        // Predicated region
        $region37: #{_cross_stitch_impl.1} parent=31 // pred_check
          %p261 = pneg %p108
        $region38: #{_cross_stitch_impl.1} parent=31 // pred_check_branch
          %263 = sbr.rel (%p261) target = $region40
        $region39: #{_cross_stitch_impl.1} parent=31 // pred_region
          _
        $region40: #{_cross_stitch_impl.1} parent=31 // pred_fallthru
          _
        // Predicated region
        $region41: #{_cross_stitch_impl.1} parent=31 // pred_check
          %p264 = pneg %p134
        $region42: #{_cross_stitch_impl.1} parent=31 // pred_check_branch
          %266 = sbr.rel (%p264) target = $region44
        $region43: #{_cross_stitch_impl.1} parent=31 // pred_region
          _
        $region44: #{_cross_stitch_impl.1} parent=31 // pred_fallthru
          _
      $region32: #{_cross_stitch_impl.1} parent=5 // pred_fallthru
        _
      %p267 = scmp.le.s32.totalorder 2, %s12
      // Predicated region
      $region45: #{_cross_stitch_impl.1} parent=5 // pred_check
        %p268 = pneg %p267
      $region46: #{_cross_stitch_impl.1} parent=5 // pred_check_branch
        %270 = sbr.rel (%p268) target = $region48
      $region47: #{_cross_stitch_impl.1} parent=5 // pred_region
        %s271 = ssub.s32 %s12, 2
        // Predicated region
        $region49: #{_cross_stitch_impl.1} parent=47 // pred_check
          %p272 = pneg %p114
        $region50: #{_cross_stitch_impl.1} parent=47 // pred_check_branch
          %274 = sbr.rel (%p272) target = $region52
        $region51: #{_cross_stitch_impl.1} parent=47 // pred_region
          %p275 = scmp.lt.s32.totalorder %s18, 1
          %s276 = scalar_select %p275, %s18, 1
          %s277 = smul.addr %s276, 8
          %s278 = scalar_lea.vmem %s3, %s277
        $region52: #{_cross_stitch_impl.1} parent=47 // pred_fallthru
          _
        // Predicated region
        $region53: #{_cross_stitch_impl.1} parent=47 // pred_check
          %p279 = pneg %p140
        $region54: #{_cross_stitch_impl.1} parent=47 // pred_check_branch
          %281 = sbr.rel (%p279) target = $region56
        $region55: #{_cross_stitch_impl.1} parent=47 // pred_region
          %p282 = scmp.lt.s32.totalorder %s18, 1
          %s283 = scalar_select %p282, %s18, 1
          %s284 = smul.addr %s283, 8
          %s285 = scalar_lea.vmem %s4, %s284
        $region56: #{_cross_stitch_impl.1} parent=47 // pred_fallthru
          _
      $region48: #{_cross_stitch_impl.1} parent=5 // pred_fallthru
        _
    $region6: #{_cross_stitch_impl.1} parent=1 // loop_footer
      %s16 = sadd.s32 1, %s12
    $region7: #{_cross_stitch_impl.1} parent=1 // loop_footer_branch
      %11 = sbr.rel target = $region3
    $region8: #{_cross_stitch_impl.1} parent=1 // loop_exit
      _
    %286 = vsyncpa [#allocation3], 1
    %s287 = scalar_lea.sflag [#allocation3], 1
    %288 = vsyncpa %s287, 1

</llo_original>
